<compile_context>
chip_gen: v5e
topology: v5e:2x2
jax: 0.10.0
libtpu: 0.0.40
codegen_flags: <defaults>
</compile_context>

<pallas_src>
import functools

import jax
import jax.numpy as jnp
from jax import lax
from jax.experimental import pallas as pl
from jax.experimental.pallas import tpu as pltpu


def _round_up(x, m):
    return ((x + m - 1) // m) * m


# ------------------------------ fused kernel -------------------------------- #

def _grami_fused_kernel(feat_ref, w_ref, b_ref, noise_ref, eps_ref, out_ref, *, meta):
    f32 = jnp.float32
    n_per_type = meta["n_per_type"]
    offs = meta["offs"]
    d_list = meta["d_list"]
    hidden = meta["hidden"]
    h1 = meta["h1"]
    h2 = meta["h2"]
    in_feat = meta["in_feat"]
    total = meta["total"]
    K = meta["K"]
    J = meta["J"]
    n_src = meta["n_src"]
    off_src = meta["off_src"]
    rec_off = meta["rec_off"]
    w_off = meta["w_off"]
    b_row = meta["b_row"]
    col = meta["col_off"]
    out_rows = meta["out_rows"]
    out_width = meta["out_width"]
    KJ = K + J
    nt = len(n_per_type)

    feat = feat_ref[...]
    w = w_ref[...]
    b = b_ref[...]
    noise = noise_ref[...]
    eps = eps_ref[...]

    def W(name, rows, cols):                  # static slice of the packed weight slab
        r0 = w_off[name]
        return w[r0:r0 + rows, 0:cols]

    def B(name, cols):                        # (1, cols) bias row, broadcasts over sublanes
        r0 = b_row[name]
        return b[r0:r0 + 1, 0:cols]

    def mm(a, bb):                            # standard NN MXU matmul, f32 accumulate
        return jnp.dot(a, bb, preferred_element_type=f32)

    def mm_t(a, bb):                          # a @ b.T (NT form, contract last axes)
        return lax.dot_general(a, bb, (((1,), (1,)), ((), ())),
                               preferred_element_type=f32)

    # ---- GraMI per-node-type fc + tanh (x_all / label_a) ----
    xs = []
    for t in range(nt):
        ft = feat[offs[t]:offs[t] + n_per_type[t], 0:d_list[t]]
        xs.append(jnp.tanh(mm(ft, W(f"fc{t}", d_list[t], hidden)) + B(f"fc{t}", hidden)))
    x = jnp.concatenate(xs, axis=0) if nt > 1 else xs[0]          # (total, hidden)

    # ---- node_encode (RGAT layers as dense equivalents -- see TODO) ----
    hiddenx = jnp.maximum(mm(x, W("gat_1", hidden, h1)) + B("gat_1", h1), 0.0)
    noise_n = noise[0:KJ * total, :]                              # (KJ*total, ndim)
    hiddene_n = jnp.maximum(mm(noise_n, W("gat_e", hidden, h1)) + B("gat_e", h1), 0.0)
    # broadcast deterministic branch over sample copies (no rep-matmul)
    hx = hiddenx if KJ == 1 else jnp.concatenate([hiddenx] * KJ, axis=0)
    hidden1_n = hx + hiddene_n
    mu_all = mm(hidden1_n, W("gat_2", h1, h2)) + B("gat_2", h2)   # (KJ*total, h2)
    lv_all = mm(hidden1_n, W("gat_3", h1, h2)) + B("gat_3", h2)   # encsto == 'full'

    # ---- feature_encode: x^T via a tiny MXU NT relayout (eye @ x^T), then mlps ----
    eye_h = jnp.eye(hidden, dtype=f32)
    xT = mm_t(eye_h, x)                                           # (hidden, total) == x.T
    hiddenf = jnp.tanh(mm(xT, W("mlp1", total, h1)) + B("mlp1", h1))
    noise_f = noise[KJ * total:KJ * total + KJ * hidden, :]
    hiddene_f = jnp.tanh(mm(noise_f, W("mlpe", hidden, h1)) + B("mlpe", h1))
    hf = hiddenf if KJ == 1 else jnp.concatenate([hiddenf] * KJ, axis=0)
    hidden1_f = hf + hiddene_f
    muf_all = mm(hidden1_f, W("mlp2", h1, h2)) + B("mlp2", h2)    # (KJ*hidden, h2)
    lvf_all = mm(hidden1_f, W("mlp3", h1, h2)) + B("mlp3", h2)

    # ---- reparameterize the last J samples (exp goes to the EUP slot) ----
    mu_j = mu_all[K * total:, :]
    lv_j = lv_all[K * total:, :]
    muf_j = muf_all[K * hidden:, :]
    lvf_j = lvf_all[K * hidden:, :]
    eps_n = eps[0:J * total, :]
    eps_f = eps[J * total:J * total + J * hidden, :]
    za = eps_n * jnp.exp(0.5 * lv_j) + mu_j                       # (J*total,  h2)
    zf = eps_f * jnp.exp(0.5 * lvf_j) + muf_j                     # (J*hidden, h2)

    # ---- decoders: accumulate raw act(z z^T) over J, scale once (eval batch mean) ----
    # TODO(synk): switch to lax.fori_loop(unroll=True) + pl.ds indexing if J grows.
    adj_acc = jnp.zeros((n_src, total), f32)
    pa_acc = jnp.zeros((total, hidden), f32)
    for j in range(J):
        zj = za[j * total:(j + 1) * total, :]
        zfj = zf[j * hidden:(j + 1) * hidden, :]
        zsrc = zj[off_src:off_src + n_src, :]
        adj_acc = adj_acc + jax.nn.sigmoid(mm_t(zsrc, zj))        # GraphDecoder  (ip)
        pa_acc = pa_acc + jnp.tanh(mm_t(zj, zfj))                 # GraphDecoder2 (ip)
    inv_j = 1.0 / float(J)
    adj_src = adj_acc * inv_j
    pred_a = pa_acc * inv_j

    # ---- mlp_recover on the (reference-quirky) src-node rows of pred_a ----
    rec_in = pred_a[rec_off:rec_off + n_src, :]
    fea_rec = jax.nn.sigmoid(mm(rec_in, W("mlp_recover", hidden, in_feat))
                             + B("mlp_recover", in_feat))

    # ---- ONE lane-dense output slab: zero it, then place every result ----
    out_ref[...] = jnp.zeros((out_rows, out_width), f32)
    out_ref[0:KJ * total, col["mu"]:col["mu"] + h2] = mu_all
    out_ref[0:KJ * total, col["lv"]:col["lv"] + h2] = lv_all
    out_ref[0:KJ * hidden, col["muf"]:col["muf"] + h2] = muf_all
    out_ref[0:KJ * hidden, col["lvf"]:col["lvf"] + h2] = lvf_all
    out_ref[0:J * total, col["za"]:col["za"] + h2] = za
    out_ref[0:J * hidden, col["zf"]:col["zf"] + h2] = zf
    out_ref[0:total, col["x"]:col["x"] + hidden] = x
    out_ref[0:total, col["pa"]:col["pa"] + hidden] = pred_a
    out_ref[0:n_src, col["adj"]:col["adj"] + total] = adj_src
    out_ref[0:n_src, col["rec"]:col["rec"] + in_feat] = fea_rec


# -------------------------------- forward ----------------------------------- #

@functools.partial(jax.jit,
                   static_argnames=("n_per_type", "hidden_dim", "K", "J", "src_node"))
def grami_forward(params, features_list, key, *, n_per_type, hidden_dim, K, J, src_node):
    f32 = jnp.float32
    n_per_type = tuple(int(n) for n in n_per_type)
    nt = len(n_per_type)
    total = sum(n_per_type)
    offs = [0]
    for n in n_per_type:
        offs.append(offs[-1] + n)
    n_src = n_per_type[src_node]
    off_src = offs[src_node]
    # fea_recover slice replicates the reference's quirky indexing exactly
    rec_off = 0 if src_node == 0 else n_per_type[src_node - 1]

    h1 = params["gat_1"][0].shape[1]
    h2 = params["gat_2"][0].shape[1]
    in_feat = params["mlp_recover"][0].shape[1]
    hidden = hidden_dim
    ndim = hidden                              # base_HGNN.__init__ reassigns ndim = hidden_dim
    reweight = ((ndim + h1) / (hidden + h1)) ** 0.5   # == 1.0 here; kept for fidelity
    KJ = K + J
    d_list = tuple(int(f.shape[1]) for f in features_list)
    max_d = max(d_list)

    # -------- packed inputs: 5 HBM->VMEM transfers total --------
    feat = jnp.concatenate(
        [jnp.pad(f.astype(f32), ((0, 0), (0, max_d - f.shape[1]))) for f in features_list],
        axis=0)                                                    # (total, max_d)

    w_width = max(hidden, h1, h2, in_feat)
    layer_names = ("gat_1", "gat_e", "gat_2", "gat_3",
                   "mlp1", "mlpe", "mlp2", "mlp3", "mlp_recover")
    w_entries = [(f"fc{t}", params["fc"][t][0]) for t in range(nt)]
    w_entries += [(name, params[name][0]) for name in layer_names]
    w_off, rows_acc, w_blocks = {}, 0, []
    for name, wmat in w_entries:
        w_off[name] = rows_acc
        rows_acc += int(wmat.shape[0])
        w_blocks.append(jnp.pad(wmat.astype(f32), ((0, 0), (0, w_width - wmat.shape[1]))))
    w_all = jnp.concatenate(w_blocks, axis=0)                      # (sum_rows, w_width)

    b_entries = [(f"fc{t}", params["fc"][t][1]) for t in range(nt)]
    b_entries += [(name, params[name][1]) for name in layer_names]
    b_row, b_blocks = {}, []
    for i, (name, bvec) in enumerate(b_entries):
        b_row[name] = i
        bb = bvec.astype(f32).reshape(1, -1)
        b_blocks.append(jnp.pad(bb, ((0, 0), (0, w_width - bb.shape[1]))))
    b_all = jnp.concatenate(b_blocks, axis=0)                      # (n_layers, w_width)

    # Bernoulli noise (node-encode rows, then feature-encode rows) and reparam eps
    k_nn, k_nf, k_en, k_ef = jax.random.split(key, 4)
    noise_n = jax.random.bernoulli(k_nn, 0.5, (KJ, total, ndim)).astype(f32) * reweight
    noise_f = jax.random.bernoulli(k_nf, 0.5, (KJ, hidden, ndim)).astype(f32) * reweight
    noise = jnp.concatenate([noise_n.reshape(KJ * total, ndim),
                             noise_f.reshape(KJ * hidden, ndim)], axis=0)
    eps_n = jax.random.normal(k_en, (J, total, h2), f32)
    eps_f = jax.random.normal(k_ef, (J, hidden, h2), f32)
    eps = jnp.concatenate([eps_n.reshape(J * total, h2),
                           eps_f.reshape(J * hidden, h2)], axis=0)

    # -------- single lane-dense output slab layout --------
    names = ("mu", "lv", "muf", "lvf", "za", "zf", "x", "pa", "adj", "rec")
    widths = (h2, h2, h2, h2, h2, h2, hidden, hidden, total, in_feat)
    col_off, c = {}, 0
    for nm, wd in zip(names, widths):
        col_off[nm] = c
        c += wd
    out_width = max(128, _round_up(c, 128))
    out_rows = _round_up(max(KJ * total, KJ * hidden), 8)

    meta = dict(n_per_type=n_per_type, offs=tuple(offs), d_list=d_list,
                hidden=hidden, h1=h1, h2=h2, in_feat=in_feat, total=total,
                K=K, J=J, n_src=n_src, off_src=off_src, rec_off=rec_off,
                w_off=w_off, b_row=b_row, col_off=col_off,
                out_rows=out_rows, out_width=out_width)

    slab = pl.pallas_call(
        functools.partial(_grami_fused_kernel, meta=meta),
        out_shape=jax.ShapeDtypeStruct((out_rows, out_width), f32),
        compiler_params=pltpu.CompilerParams(vmem_limit_bytes=64 * 1024 * 1024),
    )(feat, w_all, b_all, noise, eps)

    # -------- unpack the slab into the PyTorch-shaped outputs (cheap slices) --------
    co = col_off
    mu = slab[:KJ * total, co["mu"]:co["mu"] + h2].reshape(KJ, total, h2)
    logvar = slab[:KJ * total, co["lv"]:co["lv"] + h2].reshape(KJ, total, h2)
    muf = slab[:KJ * hidden, co["muf"]:co["muf"] + h2].reshape(KJ, hidden, h2)
    logvarf = slab[:KJ * hidden, co["lvf"]:co["lvf"] + h2].reshape(KJ, hidden, h2)
    Za = slab[:J * total, co["za"]:co["za"] + h2].reshape(J, total, h2)
    zf = slab[:J * hidden, co["zf"]:co["zf"] + h2].reshape(J, hidden, h2)
    label_a = slab[:total, co["x"]:co["x"] + hidden]
    pred_a = slab[:total, co["pa"]:co["pa"] + hidden][None]
    adj_src = slab[:n_src, co["adj"]:co["adj"] + total]
    fea_recover = slab[:n_src, co["rec"]:co["rec"] + in_feat][None]

    mu_list = [mu[:, offs[i]:offs[i + 1], :] for i in range(nt)]
    logvar_list = [logvar[:, offs[i]:offs[i + 1], :] for i in range(nt)]
    z_all = [Za[:, offs[i]:offs[i + 1], :] for i in range(nt)]
    eps_all = [eps_n[:, offs[i]:offs[i + 1], :] for i in range(nt)]
    epsf = eps_f

    rk_dc = jax.nn.sigmoid(params["rk_lgt_dc"])                    # rk ** 2 == sigmoid(rk_lgt)
    pred_adj_all, z_scaled1_all, z_scaled2_all, rk_all = [], [], [], []
    for i in range(nt):
        if i == src_node:
            continue
        pred_adj_all.append(adj_src[None, :, offs[i]:offs[i + 1]])
        z_scaled1_all.append(z_all[src_node])
        z_scaled2_all.append(z_all[i])
        rk_all.append(rk_dc)

    ac = (pred_adj_all, pred_a, fea_recover, mu_list, muf, logvar_list, logvarf,
          z_all, zf, Za, z_scaled1_all, z_scaled2_all, zf, Za,
          eps_all, epsf, rk_all)
    return label_a, ac


# ---------------------------- parameter helpers ----------------------------- #

def glorot(key, din, dout, gain=1.0):
    std = gain * (2.0 / (din + dout)) ** 0.5
    return (std * jax.random.normal(key, (din, dout))).astype(jnp.float32)


def dense_params(key, din, dout, gain=1.0):
    return (glorot(key, din, dout, gain), jnp.zeros((1, dout), jnp.float32))


# --------------------------------- main -------------------------------------- #

if __name__ == "__main__":
    key = jax.random.PRNGKey(0)

    # small ACM-like config: 3 node types, 8-aligned per-type counts so every
    # in-kernel sublane slice (K/J split, per-sample z blocks, src rows) is
    # (8,128)-tile aligned.
    n_per_type = (8, 8, 8)
    feats_dim_list = [10, 12, 6]
    num_nodes = sum(n_per_type)               # 24
    hidden_dim, hidden_dim1, hidden_dim2 = 16, 16, 8
    input_feat_dim = 10
    K, J, src_node = 1, 1, 0

    ks = jax.random.split(key, 20)
    params = {
        "fc": [dense_params(ks[i], d, hidden_dim, gain=1.414)
               for i, d in enumerate(feats_dim_list)],
        "gat_1": dense_params(ks[4], hidden_dim, hidden_dim1),
        "gat_e": dense_params(ks[5], hidden_dim, hidden_dim1),
        "gat_2": dense_params(ks[6], hidden_dim1, hidden_dim2),
        "gat_3": dense_params(ks[7], hidden_dim1, hidden_dim2),
        "mlp1": dense_params(ks[8], num_nodes, hidden_dim1),
        "mlpe": dense_params(ks[9], hidden_dim, hidden_dim1),
        "mlp2": dense_params(ks[10], hidden_dim1, hidden_dim2),
        "mlp3": dense_params(ks[11], hidden_dim1, hidden_dim2),
        "mlp_recover": dense_params(ks[12], hidden_dim, input_feat_dim),
        "rk_lgt_dc": jax.random.uniform(ks[13], (1, hidden_dim2),
                                        minval=-6.0, maxval=0.0, dtype=jnp.float32),
        "rk_lgt_dc2": jax.random.uniform(ks[14], (1, hidden_dim2),
                                         minval=-6.0, maxval=0.0, dtype=jnp.float32),
    }

    fkeys = jax.random.split(ks[15], len(feats_dim_list))
    features_list = tuple(
        jax.random.normal(fk, (n, d), jnp.float32)
        for fk, n, d in zip(fkeys, n_per_type, feats_dim_list)
    )

    label_a, ac = grami_forward(
        params, features_list, ks[16],
        n_per_type=n_per_type, hidden_dim=hidden_dim, K=K, J=J, src_node=src_node,
    )
    jax.block_until_ready((label_a, ac))
    print("KERNEL_OK")
</pallas_src>

<mosaic_0001>
module attributes {stable_mosaic.version = 11 : i64} {
  func.func @_grami_fused_kernel(%arg0: memref<24x12xf32, #tpu.memory_space<vmem>>, %arg1: memref<180x16xf32, #tpu.memory_space<vmem>>, %arg2: memref<12x16xf32, #tpu.memory_space<vmem>>, %arg3: memref<80x16xf32, #tpu.memory_space<vmem>>, %arg4: memref<40x8xf32, #tpu.memory_space<vmem>>, %arg5: memref<48x128xf32, #tpu.memory_space<vmem>>) attributes {dimension_semantics = [], scalar_prefetch = 0 : i64, scratch_operands = 0 : i64, tpu.core_type = #tpu.core_type<tc>} {
    %c0 = arith.constant 0 : index
    %c0_0 = arith.constant 0 : index
    %0 = vector.load %arg0[%c0, %c0_0] : memref<24x12xf32, #tpu.memory_space<vmem>>, vector<24x12xf32>
    %c0_1 = arith.constant 0 : index
    %c0_2 = arith.constant 0 : index
    %1 = vector.load %arg1[%c0_1, %c0_2] : memref<180x16xf32, #tpu.memory_space<vmem>>, vector<180x16xf32>
    %c0_3 = arith.constant 0 : index
    %c0_4 = arith.constant 0 : index
    %2 = vector.load %arg2[%c0_3, %c0_4] : memref<12x16xf32, #tpu.memory_space<vmem>>, vector<12x16xf32>
    %c0_5 = arith.constant 0 : index
    %c0_6 = arith.constant 0 : index
    %3 = vector.load %arg3[%c0_5, %c0_6] : memref<80x16xf32, #tpu.memory_space<vmem>>, vector<80x16xf32>
    %c0_7 = arith.constant 0 : index
    %c0_8 = arith.constant 0 : index
    %4 = vector.load %arg4[%c0_7, %c0_8] : memref<40x8xf32, #tpu.memory_space<vmem>>, vector<40x8xf32>
    %5 = vector.extract_strided_slice %0 {offsets = [0, 0], sizes = [8, 10], strides = [1, 1]} : vector<24x12xf32> to vector<8x10xf32>
    %6 = vector.extract_strided_slice %1 {offsets = [0, 0], sizes = [10, 16], strides = [1, 1]} : vector<180x16xf32> to vector<10x16xf32>
    %cst = arith.constant dense<0.000000e+00> : vector<8x16xf32>
    %7 = tpu.matmul %5, %6, %cst {dimension_numbers = #tpu.dot_dimension_numbers<[1], [0], [0], [1], [0, 0, 1, 1], [], []>} : vector<8x10xf32>, vector<10x16xf32>, vector<8x16xf32> -> vector<8x16xf32>
    %8 = vector.extract_strided_slice %2 {offsets = [0, 0], sizes = [1, 16], strides = [1, 1]} : vector<12x16xf32> to vector<1x16xf32>
    %9 = vector.broadcast %8 : vector<1x16xf32> to vector<8x16xf32>
    %10 = arith.addf %7, %9 : vector<8x16xf32>
    %11 = math.tanh %10 : vector<8x16xf32>
    %12 = vector.extract_strided_slice %0 {offsets = [8, 0], sizes = [8, 12], strides = [1, 1]} : vector<24x12xf32> to vector<8x12xf32>
    %13 = vector.extract_strided_slice %1 {offsets = [10, 0], sizes = [12, 16], strides = [1, 1]} : vector<180x16xf32> to vector<12x16xf32>
    %cst_9 = arith.constant dense<0.000000e+00> : vector<8x16xf32>
    %14 = tpu.matmul %12, %13, %cst_9 {dimension_numbers = #tpu.dot_dimension_numbers<[1], [0], [0], [1], [0, 0, 1, 1], [], []>} : vector<8x12xf32>, vector<12x16xf32>, vector<8x16xf32> -> vector<8x16xf32>
    %15 = vector.extract_strided_slice %2 {offsets = [1, 0], sizes = [1, 16], strides = [1, 1]} : vector<12x16xf32> to vector<1x16xf32>
    %16 = vector.broadcast %15 : vector<1x16xf32> to vector<8x16xf32>
    %17 = arith.addf %14, %16 : vector<8x16xf32>
    %18 = math.tanh %17 : vector<8x16xf32>
    %19 = vector.extract_strided_slice %0 {offsets = [16, 0], sizes = [8, 6], strides = [1, 1]} : vector<24x12xf32> to vector<8x6xf32>
    %20 = vector.extract_strided_slice %1 {offsets = [22, 0], sizes = [6, 16], strides = [1, 1]} : vector<180x16xf32> to vector<6x16xf32>
    %cst_10 = arith.constant dense<0.000000e+00> : vector<8x16xf32>
    %21 = tpu.matmul %19, %20, %cst_10 {dimension_numbers = #tpu.dot_dimension_numbers<[1], [0], [0], [1], [0, 0, 1, 1], [], []>} : vector<8x6xf32>, vector<6x16xf32>, vector<8x16xf32> -> vector<8x16xf32>
    %22 = vector.extract_strided_slice %2 {offsets = [2, 0], sizes = [1, 16], strides = [1, 1]} : vector<12x16xf32> to vector<1x16xf32>
    %23 = vector.broadcast %22 : vector<1x16xf32> to vector<8x16xf32>
    %24 = arith.addf %21, %23 : vector<8x16xf32>
    %25 = math.tanh %24 : vector<8x16xf32>
    %26 = tpu.concatenate %11, %18, %25 in 0 : vector<8x16xf32>, vector<8x16xf32>, vector<8x16xf32> -> vector<24x16xf32>
    %27 = vector.extract_strided_slice %1 {offsets = [28, 0], sizes = [16, 16], strides = [1, 1]} : vector<180x16xf32> to vector<16x16xf32>
    %cst_11 = arith.constant dense<0.000000e+00> : vector<24x16xf32>
    %28 = tpu.matmul %26, %27, %cst_11 {dimension_numbers = #tpu.dot_dimension_numbers<[1], [0], [0], [1], [0, 0, 1, 1], [], []>} : vector<24x16xf32>, vector<16x16xf32>, vector<24x16xf32> -> vector<24x16xf32>
    %29 = vector.extract_strided_slice %2 {offsets = [3, 0], sizes = [1, 16], strides = [1, 1]} : vector<12x16xf32> to vector<1x16xf32>
    %30 = vector.broadcast %29 : vector<1x16xf32> to vector<24x16xf32>
    %31 = arith.addf %28, %30 : vector<24x16xf32>
    %cst_12 = arith.constant 0.000000e+00 : f32
    %32 = vector.broadcast %cst_12 : f32 to vector<24x16xf32>
    %33 = arith.maximumf %31, %32 : vector<24x16xf32>
    %34 = vector.extract_strided_slice %3 {offsets = [0, 0], sizes = [48, 16], strides = [1, 1]} : vector<80x16xf32> to vector<48x16xf32>
    %35 = vector.extract_strided_slice %1 {offsets = [44, 0], sizes = [16, 16], strides = [1, 1]} : vector<180x16xf32> to vector<16x16xf32>
    %cst_13 = arith.constant dense<0.000000e+00> : vector<48x16xf32>
    %36 = tpu.matmul %34, %35, %cst_13 {dimension_numbers = #tpu.dot_dimension_numbers<[1], [0], [0], [1], [0, 0, 1, 1], [], []>} : vector<48x16xf32>, vector<16x16xf32>, vector<48x16xf32> -> vector<48x16xf32>
    %37 = vector.extract_strided_slice %2 {offsets = [4, 0], sizes = [1, 16], strides = [1, 1]} : vector<12x16xf32> to vector<1x16xf32>
    %38 = vector.broadcast %37 : vector<1x16xf32> to vector<48x16xf32>
    %39 = arith.addf %36, %38 : vector<48x16xf32>
    %cst_14 = arith.constant 0.000000e+00 : f32
    %40 = vector.broadcast %cst_14 : f32 to vector<48x16xf32>
    %41 = arith.maximumf %39, %40 : vector<48x16xf32>
    %42 = tpu.concatenate %33, %33 in 0 : vector<24x16xf32>, vector<24x16xf32> -> vector<48x16xf32>
    %43 = arith.addf %42, %41 : vector<48x16xf32>
    %44 = vector.extract_strided_slice %1 {offsets = [60, 0], sizes = [16, 8], strides = [1, 1]} : vector<180x16xf32> to vector<16x8xf32>
    %cst_15 = arith.constant dense<0.000000e+00> : vector<48x8xf32>
    %45 = tpu.matmul %43, %44, %cst_15 {dimension_numbers = #tpu.dot_dimension_numbers<[1], [0], [0], [1], [0, 0, 1, 1], [], []>} : vector<48x16xf32>, vector<16x8xf32>, vector<48x8xf32> -> vector<48x8xf32>
    %46 = vector.extract_strided_slice %2 {offsets = [5, 0], sizes = [1, 8], strides = [1, 1]} : vector<12x16xf32> to vector<1x8xf32>
    %47 = vector.broadcast %46 : vector<1x8xf32> to vector<48x8xf32>
    %48 = arith.addf %45, %47 : vector<48x8xf32>
    %49 = vector.extract_strided_slice %1 {offsets = [76, 0], sizes = [16, 8], strides = [1, 1]} : vector<180x16xf32> to vector<16x8xf32>
    %cst_16 = arith.constant dense<0.000000e+00> : vector<48x8xf32>
    %50 = tpu.matmul %43, %49, %cst_16 {dimension_numbers = #tpu.dot_dimension_numbers<[1], [0], [0], [1], [0, 0, 1, 1], [], []>} : vector<48x16xf32>, vector<16x8xf32>, vector<48x8xf32> -> vector<48x8xf32>
    %51 = vector.extract_strided_slice %2 {offsets = [6, 0], sizes = [1, 8], strides = [1, 1]} : vector<12x16xf32> to vector<1x8xf32>
    %52 = vector.broadcast %51 : vector<1x8xf32> to vector<48x8xf32>
    %53 = arith.addf %50, %52 : vector<48x8xf32>
    %54 = tpu.iota {dimensions = array<i32: 0>} : vector<16x16xi32>
    %55 = tpu.iota {dimensions = array<i32: 1>} : vector<16x16xi32>
    %c0_i32 = arith.constant 0 : i32
    %56 = vector.broadcast %c0_i32 : i32 to vector<16x16xi32>
    %57 = arith.addi %54, %56 : vector<16x16xi32>
    %58 = arith.cmpi eq, %57, %55 : vector<16x16xi32>
    %59 = arith.extui %58 : vector<16x16xi1> to vector<16x16xi32>
    %60 = arith.sitofp %59 : vector<16x16xi32> to vector<16x16xf32>
    %cst_17 = arith.constant dense<0.000000e+00> : vector<16x24xf32>
    %61 = tpu.matmul %60, %26, %cst_17 {dimension_numbers = #tpu.dot_dimension_numbers<[1], [1], [0], [0], [0, 0, 1, 0], [], []>} : vector<16x16xf32>, vector<24x16xf32>, vector<16x24xf32> -> vector<16x24xf32>
    %62 = vector.extract_strided_slice %1 {offsets = [92, 0], sizes = [24, 16], strides = [1, 1]} : vector<180x16xf32> to vector<24x16xf32>
    %cst_18 = arith.constant dense<0.000000e+00> : vector<16x16xf32>
    %63 = tpu.matmul %61, %62, %cst_18 {dimension_numbers = #tpu.dot_dimension_numbers<[1], [0], [0], [1], [0, 0, 1, 1], [], []>} : vector<16x24xf32>, vector<24x16xf32>, vector<16x16xf32> -> vector<16x16xf32>
    %64 = vector.extract_strided_slice %2 {offsets = [7, 0], sizes = [1, 16], strides = [1, 1]} : vector<12x16xf32> to vector<1x16xf32>
    %65 = vector.broadcast %64 : vector<1x16xf32> to vector<16x16xf32>
    %66 = arith.addf %63, %65 : vector<16x16xf32>
    %67 = math.tanh %66 : vector<16x16xf32>
    %68 = vector.extract_strided_slice %3 {offsets = [48, 0], sizes = [32, 16], strides = [1, 1]} : vector<80x16xf32> to vector<32x16xf32>
    %69 = vector.extract_strided_slice %1 {offsets = [116, 0], sizes = [16, 16], strides = [1, 1]} : vector<180x16xf32> to vector<16x16xf32>
    %cst_19 = arith.constant dense<0.000000e+00> : vector<32x16xf32>
    %70 = tpu.matmul %68, %69, %cst_19 {dimension_numbers = #tpu.dot_dimension_numbers<[1], [0], [0], [1], [0, 0, 1, 1], [], []>} : vector<32x16xf32>, vector<16x16xf32>, vector<32x16xf32> -> vector<32x16xf32>
    %71 = vector.extract_strided_slice %2 {offsets = [8, 0], sizes = [1, 16], strides = [1, 1]} : vector<12x16xf32> to vector<1x16xf32>
    %72 = vector.broadcast %71 : vector<1x16xf32> to vector<32x16xf32>
    %73 = arith.addf %70, %72 : vector<32x16xf32>
    %74 = math.tanh %73 : vector<32x16xf32>
    %75 = tpu.concatenate %67, %67 in 0 : vector<16x16xf32>, vector<16x16xf32> -> vector<32x16xf32>
    %76 = arith.addf %75, %74 : vector<32x16xf32>
    %77 = vector.extract_strided_slice %1 {offsets = [132, 0], sizes = [16, 8], strides = [1, 1]} : vector<180x16xf32> to vector<16x8xf32>
    %cst_20 = arith.constant dense<0.000000e+00> : vector<32x8xf32>
    %78 = tpu.matmul %76, %77, %cst_20 {dimension_numbers = #tpu.dot_dimension_numbers<[1], [0], [0], [1], [0, 0, 1, 1], [], []>} : vector<32x16xf32>, vector<16x8xf32>, vector<32x8xf32> -> vector<32x8xf32>
    %79 = vector.extract_strided_slice %2 {offsets = [9, 0], sizes = [1, 8], strides = [1, 1]} : vector<12x16xf32> to vector<1x8xf32>
    %80 = vector.broadcast %79 : vector<1x8xf32> to vector<32x8xf32>
    %81 = arith.addf %78, %80 : vector<32x8xf32>
    %82 = vector.extract_strided_slice %1 {offsets = [148, 0], sizes = [16, 8], strides = [1, 1]} : vector<180x16xf32> to vector<16x8xf32>
    %cst_21 = arith.constant dense<0.000000e+00> : vector<32x8xf32>
    %83 = tpu.matmul %76, %82, %cst_21 {dimension_numbers = #tpu.dot_dimension_numbers<[1], [0], [0], [1], [0, 0, 1, 1], [], []>} : vector<32x16xf32>, vector<16x8xf32>, vector<32x8xf32> -> vector<32x8xf32>
    %84 = vector.extract_strided_slice %2 {offsets = [10, 0], sizes = [1, 8], strides = [1, 1]} : vector<12x16xf32> to vector<1x8xf32>
    %85 = vector.broadcast %84 : vector<1x8xf32> to vector<32x8xf32>
    %86 = arith.addf %83, %85 : vector<32x8xf32>
    %87 = vector.extract_strided_slice %48 {offsets = [24, 0], sizes = [24, 8], strides = [1, 1]} : vector<48x8xf32> to vector<24x8xf32>
    %88 = vector.extract_strided_slice %53 {offsets = [24, 0], sizes = [24, 8], strides = [1, 1]} : vector<48x8xf32> to vector<24x8xf32>
    %89 = vector.extract_strided_slice %81 {offsets = [16, 0], sizes = [16, 8], strides = [1, 1]} : vector<32x8xf32> to vector<16x8xf32>
    %90 = vector.extract_strided_slice %86 {offsets = [16, 0], sizes = [16, 8], strides = [1, 1]} : vector<32x8xf32> to vector<16x8xf32>
    %91 = vector.extract_strided_slice %4 {offsets = [0, 0], sizes = [24, 8], strides = [1, 1]} : vector<40x8xf32> to vector<24x8xf32>
    %92 = vector.extract_strided_slice %4 {offsets = [24, 0], sizes = [16, 8], strides = [1, 1]} : vector<40x8xf32> to vector<16x8xf32>
    %cst_22 = arith.constant 5.000000e-01 : f32
    %93 = vector.broadcast %cst_22 : f32 to vector<24x8xf32>
    %94 = arith.mulf %93, %88 : vector<24x8xf32>
    %95 = math.exp %94 : vector<24x8xf32>
    %96 = arith.mulf %91, %95 : vector<24x8xf32>
    %97 = arith.addf %96, %87 : vector<24x8xf32>
    %cst_23 = arith.constant 5.000000e-01 : f32
    %98 = vector.broadcast %cst_23 : f32 to vector<16x8xf32>
    %99 = arith.mulf %98, %90 : vector<16x8xf32>
    %100 = math.exp %99 : vector<16x8xf32>
    %101 = arith.mulf %92, %100 : vector<16x8xf32>
    %102 = arith.addf %101, %89 : vector<16x8xf32>
    %cst_24 = arith.constant 0.000000e+00 : f32
    %103 = vector.broadcast %cst_24 : f32 to vector<8x24xf32>
    %cst_25 = arith.constant 0.000000e+00 : f32
    %104 = vector.broadcast %cst_25 : f32 to vector<24x16xf32>
    %105 = vector.extract_strided_slice %97 {offsets = [0, 0], sizes = [8, 8], strides = [1, 1]} : vector<24x8xf32> to vector<8x8xf32>
    %cst_26 = arith.constant dense<0.000000e+00> : vector<8x24xf32>
    %106 = tpu.matmul %105, %97, %cst_26 {dimension_numbers = #tpu.dot_dimension_numbers<[1], [1], [0], [0], [0, 0, 1, 0], [], []>} : vector<8x8xf32>, vector<24x8xf32>, vector<8x24xf32> -> vector<8x24xf32>
    %107 = arith.negf %106 : vector<8x24xf32>
    %108 = math.exp %107 : vector<8x24xf32>
    %cst_27 = arith.constant 1.000000e+00 : f32
    %109 = vector.broadcast %cst_27 : f32 to vector<8x24xf32>
    %110 = arith.addf %109, %108 : vector<8x24xf32>
    %111 = arith.divf %109, %110 : vector<8x24xf32>
    %112 = arith.addf %103, %111 : vector<8x24xf32>
    %cst_28 = arith.constant dense<0.000000e+00> : vector<24x16xf32>
    %113 = tpu.matmul %97, %102, %cst_28 {dimension_numbers = #tpu.dot_dimension_numbers<[1], [1], [0], [0], [0, 0, 1, 0], [], []>} : vector<24x8xf32>, vector<16x8xf32>, vector<24x16xf32> -> vector<24x16xf32>
    %114 = math.tanh %113 : vector<24x16xf32>
    %115 = arith.addf %104, %114 : vector<24x16xf32>
    %cst_29 = arith.constant 1.000000e+00 : f32
    %116 = vector.broadcast %cst_29 : f32 to vector<8x24xf32>
    %117 = arith.mulf %112, %116 : vector<8x24xf32>
    %cst_30 = arith.constant 1.000000e+00 : f32
    %118 = vector.broadcast %cst_30 : f32 to vector<24x16xf32>
    %119 = arith.mulf %115, %118 : vector<24x16xf32>
    %120 = vector.extract_strided_slice %119 {offsets = [0, 0], sizes = [8, 16], strides = [1, 1]} : vector<24x16xf32> to vector<8x16xf32>
    %121 = vector.extract_strided_slice %1 {offsets = [164, 0], sizes = [16, 10], strides = [1, 1]} : vector<180x16xf32> to vector<16x10xf32>
    %cst_31 = arith.constant dense<0.000000e+00> : vector<8x10xf32>
    %122 = tpu.matmul %120, %121, %cst_31 {dimension_numbers = #tpu.dot_dimension_numbers<[1], [0], [0], [1], [0, 0, 1, 1], [], []>} : vector<8x16xf32>, vector<16x10xf32>, vector<8x10xf32> -> vector<8x10xf32>
    %123 = vector.extract_strided_slice %2 {offsets = [11, 0], sizes = [1, 10], strides = [1, 1]} : vector<12x16xf32> to vector<1x10xf32>
    %124 = vector.broadcast %123 : vector<1x10xf32> to vector<8x10xf32>
    %125 = arith.addf %122, %124 : vector<8x10xf32>
    %126 = arith.negf %125 : vector<8x10xf32>
    %127 = math.exp %126 : vector<8x10xf32>
    %cst_32 = arith.constant 1.000000e+00 : f32
    %128 = vector.broadcast %cst_32 : f32 to vector<8x10xf32>
    %129 = arith.addf %128, %127 : vector<8x10xf32>
    %130 = arith.divf %128, %129 : vector<8x10xf32>
    %cst_33 = arith.constant 0.000000e+00 : f32
    %131 = vector.broadcast %cst_33 : f32 to vector<48x128xf32>
    %c0_34 = arith.constant 0 : index
    %c0_35 = arith.constant 0 : index
    %132 = vector.load %arg5[%c0_34, %c0_35] : memref<48x128xf32, #tpu.memory_space<vmem>>, vector<48x128xf32>
    tpu.vector_store %arg5[%c0_34, %c0_35], %131 {strides = array<i32>} : memref<48x128xf32, #tpu.memory_space<vmem>>, vector<48x128xf32>,
    %c0_36 = arith.constant 0 : index
    %c0_37 = arith.constant 0 : index
    %133 = vector.load %arg5[%c0_36, %c0_37] : memref<48x128xf32, #tpu.memory_space<vmem>>, vector<48x8xf32>
    tpu.vector_store %arg5[%c0_36, %c0_37], %48 {strides = array<i32>} : memref<48x128xf32, #tpu.memory_space<vmem>>, vector<48x8xf32>,
    %c0_38 = arith.constant 0 : index
    %c8 = arith.constant 8 : index
    %134 = vector.load %arg5[%c0_38, %c8] : memref<48x128xf32, #tpu.memory_space<vmem>>, vector<48x8xf32>
    tpu.vector_store %arg5[%c0_38, %c8], %53 {strides = array<i32>} : memref<48x128xf32, #tpu.memory_space<vmem>>, vector<48x8xf32>,
    %c0_39 = arith.constant 0 : index
    %c16 = arith.constant 16 : index
    %135 = vector.load %arg5[%c0_39, %c16] : memref<48x128xf32, #tpu.memory_space<vmem>>, vector<32x8xf32>
    tpu.vector_store %arg5[%c0_39, %c16], %81 {strides = array<i32>} : memref<48x128xf32, #tpu.memory_space<vmem>>, vector<32x8xf32>,
    %c0_40 = arith.constant 0 : index
    %c24 = arith.constant 24 : index
    %136 = vector.load %arg5[%c0_40, %c24] : memref<48x128xf32, #tpu.memory_space<vmem>>, vector<32x8xf32>
    tpu.vector_store %arg5[%c0_40, %c24], %86 {strides = array<i32>} : memref<48x128xf32, #tpu.memory_space<vmem>>, vector<32x8xf32>,
    %c0_41 = arith.constant 0 : index
    %c32 = arith.constant 32 : index
    %137 = vector.load %arg5[%c0_41, %c32] : memref<48x128xf32, #tpu.memory_space<vmem>>, vector<24x8xf32>
    tpu.vector_store %arg5[%c0_41, %c32], %97 {strides = array<i32>} : memref<48x128xf32, #tpu.memory_space<vmem>>, vector<24x8xf32>,
    %c0_42 = arith.constant 0 : index
    %c40 = arith.constant 40 : index
    %138 = vector.load %arg5[%c0_42, %c40] : memref<48x128xf32, #tpu.memory_space<vmem>>, vector<16x8xf32>
    tpu.vector_store %arg5[%c0_42, %c40], %102 {strides = array<i32>} : memref<48x128xf32, #tpu.memory_space<vmem>>, vector<16x8xf32>,
    %c0_43 = arith.constant 0 : index
    %c48 = arith.constant 48 : index
    %139 = vector.load %arg5[%c0_43, %c48] : memref<48x128xf32, #tpu.memory_space<vmem>>, vector<24x16xf32>
    tpu.vector_store %arg5[%c0_43, %c48], %26 {strides = array<i32>} : memref<48x128xf32, #tpu.memory_space<vmem>>, vector<24x16xf32>,
    %c0_44 = arith.constant 0 : index
    %c64 = arith.constant 64 : index
    %140 = vector.load %arg5[%c0_44, %c64] : memref<48x128xf32, #tpu.memory_space<vmem>>, vector<24x16xf32>
    tpu.vector_store %arg5[%c0_44, %c64], %119 {strides = array<i32>} : memref<48x128xf32, #tpu.memory_space<vmem>>, vector<24x16xf32>,
    %c0_45 = arith.constant 0 : index
    %c80 = arith.constant 80 : index
    %141 = vector.load %arg5[%c0_45, %c80] : memref<48x128xf32, #tpu.memory_space<vmem>>, vector<8x24xf32>
    tpu.vector_store %arg5[%c0_45, %c80], %117 {strides = array<i32>} : memref<48x128xf32, #tpu.memory_space<vmem>>, vector<8x24xf32>,
    %c0_46 = arith.constant 0 : index
    %c104 = arith.constant 104 : index
    %142 = vector.load %arg5[%c0_46, %c104] : memref<48x128xf32, #tpu.memory_space<vmem>>, vector<8x10xf32>
    tpu.vector_store %arg5[%c0_46, %c104], %130 {strides = array<i32>} : memref<48x128xf32, #tpu.memory_space<vmem>>, vector<8x10xf32>,
    return
  }
}

</mosaic_0001>

<llo_original>
// kernel: grami_forward.3
$region0: #{grami_forward.3}
  #allocation0 [shape = 'u32[]', space=smem, size = 0x4, offset = 0x4, fixed_abs, tag = 'smem constant byte address 0x4 - core index']
  #allocation1 [shape = 'u32[72,128]{1,0:T(1,128)}', space=vmem, size = 0x9000, scoped, tag = 'internal scratch']
  %s0 = inlined_call_operand.vmem [shape: f32[24,12], index: 0, kind: input, shape index: {}]
  %s1 = inlined_call_operand.vmem [shape: f32[180,16], index: 1, kind: input, shape index: {}]
  %s2 = inlined_call_operand.vmem [shape: f32[12,16], index: 2, kind: input, shape index: {}]
  %s3 = inlined_call_operand.vmem [shape: f32[80,16], index: 3, kind: input, shape index: {}]
  %s4 = inlined_call_operand.vmem [shape: f32[40,8], index: 4, kind: input, shape index: {}]
  %s5 = inlined_call_operand.vmem [shape: f32[48,128], index: 5, kind: output, shape index: {}]
  %s6 = sld [smem:[#allocation0]]
  $region30: #{grami_forward.3} parent=0
    _
  %s8 = ssub.s32 1, %s6
  %s9 = scalar_select 0, %s8, %s6
  // Predicated region
  $region2: #{grami_forward.3} parent=0 // pred_check
    _
  $region3: #{grami_forward.3} parent=0 // pred_check_branch
    %11 = sbr.rel (0) target = $region5
  $region4: #{grami_forward.3} parent=0 // pred_region
    _
  $region5: #{grami_forward.3} parent=0 // pred_fallthru
    _
  // Predicated region
  $region6: #{grami_forward.3} parent=0 // pred_check
    _
  $region7: #{grami_forward.3} parent=0 // pred_check_branch
    %13 = sbr.rel (0) target = $region9
  $region8: #{grami_forward.3} parent=0 // pred_region
    _
  $region9: #{grami_forward.3} parent=0 // pred_fallthru
    _
  // Predicated region
  $region10: #{grami_forward.3} parent=0 // pred_check
    _
  $region11: #{grami_forward.3} parent=0 // pred_check_branch
    %15 = sbr.rel (0) target = $region13
  $region12: #{grami_forward.3} parent=0 // pred_region
    _
  $region13: #{grami_forward.3} parent=0 // pred_fallthru
    _
  // Predicated region
  $region14: #{grami_forward.3} parent=0 // pred_check
    _
  $region15: #{grami_forward.3} parent=0 // pred_check_branch
    %17 = sbr.rel (0) target = $region17
  $region16: #{grami_forward.3} parent=0 // pred_region
    _
  $region17: #{grami_forward.3} parent=0 // pred_fallthru
    _
  // Predicated region
  $region18: #{grami_forward.3} parent=0 // pred_check
    _
  $region19: #{grami_forward.3} parent=0 // pred_check_branch
    %19 = sbr.rel (0) target = $region21
  $region20: #{grami_forward.3} parent=0 // pred_region
    _
  $region21: #{grami_forward.3} parent=0 // pred_fallthru
    _
  %v20 = vld [vmem:[%s0] sm:$0xff]
  %v21 = vld [vmem:[%s0 + $0x8] sm:$0xff]
  %v22 = vld [vmem:[%s0 + $0x10] sm:$0xff]
  %v23 = vld [vmem:[%s1] sm:$0xff]
  %v24 = vld [vmem:[%s1 + $0x8] sm:$0xff]
  %v25 = vld [vmem:[%s1 + $0x10] sm:$0xff]
  %v26 = vld [vmem:[%s1 + $0x18] sm:$0xff]
  %v27 = vld [vmem:[%s1 + $0x20] sm:$0xff]
  %v28 = vld [vmem:[%s1 + $0x28] sm:$0xff]
  %v29 = vld [vmem:[%s1 + $0x30] sm:$0xff]
  %v30 = vld [vmem:[%s1 + $0x38] sm:$0xff]
  %v31 = vld [vmem:[%s1 + $0x40] sm:$0xff]
  %v32 = vld [vmem:[%s1 + $0x48] sm:$0xff]
  %v33 = vld [vmem:[%s1 + $0x50] sm:$0xff]
  %v34 = vld [vmem:[%s1 + $0x58] sm:$0xff]
  %v35 = vld [vmem:[%s1 + $0x60] sm:$0xff]
  %v36 = vld [vmem:[%s1 + $0x68] sm:$0xff]
  %v37 = vld [vmem:[%s1 + $0x70] sm:$0xff]
  %v38 = vld [vmem:[%s1 + $0x78] sm:$0xff]
  %v39 = vld [vmem:[%s1 + $0x80] sm:$0xff]
  %v40 = vld [vmem:[%s1 + $0x88] sm:$0xff]
  %v41 = vld [vmem:[%s1 + $0x90] sm:$0xff]
  %v42 = vld [vmem:[%s1 + $0x98] sm:$0xff]
  %v43 = vld [vmem:[%s1 + $0xa0] sm:$0xff]
  %v44 = vld [vmem:[%s1 + $0xa8] sm:$0xff]
  %v45 = vld [vmem:[%s1 + $0xb0] sm:$0xf]
  %v46 = vld [vmem:[%s2] sm:$0xff]
  %v47 = vld [vmem:[%s2 + $0x8] sm:$0xf]
  %v48 = vld [vmem:[%s3] sm:$0xff]
  %v49 = vld [vmem:[%s3 + $0x8] sm:$0xff]
  %v50 = vld [vmem:[%s3 + $0x10] sm:$0xff]
  %v51 = vld [vmem:[%s3 + $0x18] sm:$0xff]
  %v52 = vld [vmem:[%s3 + $0x20] sm:$0xff]
  %v53 = vld [vmem:[%s3 + $0x28] sm:$0xff]
  %v54 = vld [vmem:[%s3 + $0x30] sm:$0xff]
  %v55 = vld [vmem:[%s3 + $0x38] sm:$0xff]
  %v56 = vld [vmem:[%s3 + $0x40] sm:$0xff]
  %v57 = vld [vmem:[%s3 + $0x48] sm:$0xff]
  %v58 = vld [vmem:[%s4] sm:$0xff]
  %v59 = vld [vmem:[%s4 + $0x8] sm:$0xff]
  %v60 = vld [vmem:[%s4 + $0x10] sm:$0xff]
  %v61 = vld [vmem:[%s4 + $0x18] sm:$0xff]
  %v62 = vld [vmem:[%s4 + $0x20] sm:$0xff]
  %v63 = vperm.slane %v46, 0
  %vm64 = vcmask 80896
  %v66 = vsel %vm64, %v20, 0
  %vm68 = vcmask 1041408
  %v70 = vsel %vm68, %v24, 0
  %72 = vmatpush.msra.mxu0 0.0
  %73 = vmatpush.msra.mxu0 0.0
  %74 = vmatpush.msra.mxu0 0.0
  %75 = vmatpush.msra.mxu0 0.0
  %76 = vmatpush.msra.mxu0 0.0
  %77 = vmatpush.msra.mxu0 0.0
  %78 = vmatpush.msra.mxu0 0.0
  %79 = vmatpush.msra.mxu0 0.0
  %80 = vmatpush.msra.mxu0 0.0
  %81 = vmatpush.msra.mxu0 0.0
  %82 = vmatpush.msra.mxu0 0.0
  %83 = vmatpush.msra.mxu0 0.0
  %84 = vmatpush.msra.mxu0 0.0
  %85 = vmatpush.msra.mxu0 0.0
  %86 = vmatpush.msra.mxu0 %v70
  %87 = vmatpush.msra.mxu0 %v23
  %88 = vmatmul.f32.gmra.mxu0 %v66
  %v89 = vpop.f32.mrf.mxu0
  %v90 = vadd.f32 %v63, %v89
  %91 = vdwg.mxu0
  %v92 = vtanh.pop %v90
  %v93 = vperm.slane %v46, 1
  %vm95 = vcmask 1045504
  %v96 = vrot.slane %v24, 2
  %v97 = vrot.slane %v25, 2
  %v98 = vsel %vm95, %v96, %v97
  %vm100 = vcmask 97280
  %v102 = vsel %vm100, %v21, 0
  %vm104 = vcmask 1043456
  %v105 = vsel %vm104, %v97, 0
  %107 = vmatpush.msra.mxu0 0.0
  %108 = vmatpush.msra.mxu0 0.0
  %109 = vmatpush.msra.mxu0 0.0
  %110 = vmatpush.msra.mxu0 0.0
  %111 = vmatpush.msra.mxu0 0.0
  %112 = vmatpush.msra.mxu0 0.0
  %113 = vmatpush.msra.mxu0 0.0
  %114 = vmatpush.msra.mxu0 0.0
  %115 = vmatpush.msra.mxu0 0.0
  %116 = vmatpush.msra.mxu0 0.0
  %117 = vmatpush.msra.mxu0 0.0
  %118 = vmatpush.msra.mxu0 0.0
  %119 = vmatpush.msra.mxu0 0.0
  %120 = vmatpush.msra.mxu0 0.0
  %121 = vmatpush.msra.mxu0 %v105
  %122 = vmatpush.msra.mxu0 %v98
  %123 = vmatmul.f32.gmra.mxu0 %v102
  %v124 = vpop.f32.mrf.mxu0
  %v125 = vadd.f32 %v93, %v124
  %126 = vdwg.mxu0
  %v127 = vtanh.pop %v125
  %v128 = vperm.slane %v46, 2
  %v130 = vrot.slane %v25, 6
  %v131 = vrot.slane %v26, 6
  %v132 = vsel %vm68, %v130, %v131
  %vm133 = vcmask 48128
  %v135 = vsel %vm133, %v22, 0
  %v137 = vsel %vm95, %v132, 0
  %139 = vmatpush.msra.mxu0 0.0
  %140 = vmatpush.msra.mxu0 0.0
  %141 = vmatpush.msra.mxu0 0.0
  %142 = vmatpush.msra.mxu0 0.0
  %143 = vmatpush.msra.mxu0 0.0
  %144 = vmatpush.msra.mxu0 0.0
  %145 = vmatpush.msra.mxu0 0.0
  %146 = vmatpush.msra.mxu0 0.0
  %147 = vmatpush.msra.mxu0 0.0
  %148 = vmatpush.msra.mxu0 0.0
  %149 = vmatpush.msra.mxu0 0.0
  %150 = vmatpush.msra.mxu0 0.0
  %151 = vmatpush.msra.mxu0 0.0
  %152 = vmatpush.msra.mxu0 0.0
  %153 = vmatpush.msra.mxu0 0.0
  %154 = vmatpush.msra.mxu0 %v137
  %155 = vmatmul.f32.gmra.mxu0 %v135
  %v156 = vpop.f32.mrf.mxu0
  %v157 = vadd.f32 %v128, %v156
  %158 = vdwg.mxu0
  %v159 = vtanh.pop %v157
  %v160 = vperm.slane %v46, 3
  %v163 = vrot.slane %v26, 4
  %v164 = vrot.slane %v27, 4
  %v165 = vsel %vm104, %v163, %v164
  %v166 = vrot.slane %v28, 4
  %v167 = vsel %vm104, %v164, %v166
  %vm170 = vcmask 130048
  %v172 = vsel %vm170, %v92, 0
  %v175 = vsel %vm170, %v127, 0
  %v178 = vsel %vm170, %v159, 0
  %180 = vmatpush.msra.mxu0 0.0
  %181 = vmatpush.msra.mxu0 0.0
  %182 = vmatpush.msra.mxu0 0.0
  %183 = vmatpush.msra.mxu0 0.0
  %184 = vmatpush.msra.mxu0 0.0
  %185 = vmatpush.msra.mxu0 0.0
  %186 = vmatpush.msra.mxu0 0.0
  %187 = vmatpush.msra.mxu0 0.0
  %188 = vmatpush.msra.mxu0 0.0
  %189 = vmatpush.msra.mxu0 0.0
  %190 = vmatpush.msra.mxu0 0.0
  %191 = vmatpush.msra.mxu0 0.0
  %192 = vmatpush.msra.mxu0 0.0
  %193 = vmatpush.msra.mxu0 0.0
  %194 = vmatpush.msra.mxu0 %v167
  %195 = vmatpush.msra.mxu0 %v165
  %196 = vmatmul.f32.gmra.mxu0 %v172
  %v197 = vpop.f32.mrf.mxu0
  %v198 = vadd.f32 %v160, %v197
  %199 = vmatmul.f32.gmra.mxu0 %v175
  %v200 = vpop.f32.mrf.mxu0
  %v201 = vadd.f32 %v160, %v200
  %202 = vmatmul.f32.gmra.mxu0 %v178
  %v203 = vpop.f32.mrf.mxu0
  %v204 = vadd.f32 %v160, %v203
  %205 = vdwg.mxu0
  %v206 = vmax.f32 %v198, 0.0
  %v207 = vmax.f32 %v201, 0.0
  %v208 = vmax.f32 %v204, 0.0
  %v209 = vperm.slane %v46, 4
  %v212 = vrot.slane %v29, 4
  %v213 = vsel %vm104, %v166, %v212
  %v214 = vrot.slane %v30, 4
  %v215 = vsel %vm104, %v212, %v214
  %v219 = vsel %vm170, %v48, 0
  %v222 = vsel %vm170, %v49, 0
  %v225 = vsel %vm170, %v50, 0
  %v228 = vsel %vm170, %v51, 0
  %v231 = vsel %vm170, %v52, 0
  %v234 = vsel %vm170, %v53, 0
  %236 = vmatpush.msra.mxu0 0.0
  %237 = vmatpush.msra.mxu0 0.0
  %238 = vmatpush.msra.mxu0 0.0
  %239 = vmatpush.msra.mxu0 0.0
  %240 = vmatpush.msra.mxu0 0.0
  %241 = vmatpush.msra.mxu0 0.0
  %242 = vmatpush.msra.mxu0 0.0
  %243 = vmatpush.msra.mxu0 0.0
  %244 = vmatpush.msra.mxu0 0.0
  %245 = vmatpush.msra.mxu0 0.0
  %246 = vmatpush.msra.mxu0 0.0
  %247 = vmatpush.msra.mxu0 0.0
  %248 = vmatpush.msra.mxu0 0.0
  %249 = vmatpush.msra.mxu0 0.0
  %250 = vmatpush.msra.mxu0 %v215
  %251 = vmatpush.msra.mxu0 %v213
  %252 = vmatmul.f32.gmra.mxu0 %v219
  %v253 = vpop.f32.mrf.mxu0
  %v254 = vadd.f32 %v209, %v253
  %255 = vmatmul.f32.gmra.mxu0 %v222
  %v256 = vpop.f32.mrf.mxu0
  %v257 = vadd.f32 %v209, %v256
  %258 = vmatmul.f32.gmra.mxu0 %v225
  %v259 = vpop.f32.mrf.mxu0
  %v260 = vadd.f32 %v209, %v259
  %261 = vmatmul.f32.gmra.mxu0 %v228
  %v262 = vpop.f32.mrf.mxu0
  %v263 = vadd.f32 %v209, %v262
  %264 = vmatmul.f32.gmra.mxu0 %v231
  %v265 = vpop.f32.mrf.mxu0
  %v266 = vadd.f32 %v209, %v265
  %267 = vmatmul.f32.gmra.mxu0 %v234
  %v268 = vpop.f32.mrf.mxu0
  %v269 = vadd.f32 %v209, %v268
  %270 = vdwg.mxu0
  %v271 = vmax.f32 %v254, 0.0
  %v272 = vmax.f32 %v257, 0.0
  %v273 = vmax.f32 %v260, 0.0
  %v274 = vmax.f32 %v263, 0.0
  %v275 = vmax.f32 %v266, 0.0
  %v276 = vmax.f32 %v269, 0.0
  %v277 = vadd.f32 %v206, %v271
  %v278 = vadd.f32 %v207, %v272
  %v279 = vadd.f32 %v208, %v273
  %v280 = vadd.f32 %v206, %v274
  %v281 = vadd.f32 %v207, %v275
  %v282 = vadd.f32 %v208, %v276
  %v283 = vperm.slane %v46, 5
  %v286 = vrot.slane %v31, 4
  %v287 = vsel %vm104, %v214, %v286
  %v288 = vrot.slane %v32, 4
  %v289 = vsel %vm104, %v286, %v288
  %v293 = vsel %vm170, %v277, 0
  %v296 = vsel %vm170, %v278, 0
  %v299 = vsel %vm170, %v279, 0
  %v302 = vsel %vm170, %v280, 0
  %v305 = vsel %vm170, %v281, 0
  %v308 = vsel %vm170, %v282, 0
  %310 = vmatpush.msra.mxu0 0.0
  %311 = vmatpush.msra.mxu0 0.0
  %312 = vmatpush.msra.mxu0 0.0
  %313 = vmatpush.msra.mxu0 0.0
  %314 = vmatpush.msra.mxu0 0.0
  %315 = vmatpush.msra.mxu0 0.0
  %316 = vmatpush.msra.mxu0 0.0
  %317 = vmatpush.msra.mxu0 0.0
  %318 = vmatpush.msra.mxu0 0.0
  %319 = vmatpush.msra.mxu0 0.0
  %320 = vmatpush.msra.mxu0 0.0
  %321 = vmatpush.msra.mxu0 0.0
  %322 = vmatpush.msra.mxu0 0.0
  %323 = vmatpush.msra.mxu0 0.0
  %324 = vmatpush.msra.mxu0 %v289
  %325 = vmatpush.msra.mxu0 %v287
  %326 = vmatmul.f32.gmra.mxu0 %v293
  %v327 = vpop.f32.mrf.mxu0
  %v328 = vadd.f32 %v283, %v327
  %329 = vmatmul.f32.gmra.mxu0 %v296
  %v330 = vpop.f32.mrf.mxu0
  %v331 = vadd.f32 %v283, %v330
  %332 = vmatmul.f32.gmra.mxu0 %v299
  %v333 = vpop.f32.mrf.mxu0
  %v334 = vadd.f32 %v283, %v333
  %335 = vmatmul.f32.gmra.mxu0 %v302
  %v336 = vpop.f32.mrf.mxu0
  %v337 = vadd.f32 %v283, %v336
  %338 = vmatmul.f32.gmra.mxu0 %v305
  %v339 = vpop.f32.mrf.mxu0
  %v340 = vadd.f32 %v283, %v339
  %341 = vmatmul.f32.gmra.mxu0 %v308
  %v342 = vpop.f32.mrf.mxu0
  %v343 = vadd.f32 %v283, %v342
  %344 = vdwg.mxu0
  %v345 = vperm.slane %v46, 6
  %v348 = vrot.slane %v33, 4
  %v349 = vsel %vm104, %v288, %v348
  %v350 = vrot.slane %v34, 4
  %v351 = vsel %vm104, %v348, %v350
  %354 = vmatpush.msra.mxu0 0.0
  %355 = vmatpush.msra.mxu0 0.0
  %356 = vmatpush.msra.mxu0 0.0
  %357 = vmatpush.msra.mxu0 0.0
  %358 = vmatpush.msra.mxu0 0.0
  %359 = vmatpush.msra.mxu0 0.0
  %360 = vmatpush.msra.mxu0 0.0
  %361 = vmatpush.msra.mxu0 0.0
  %362 = vmatpush.msra.mxu0 0.0
  %363 = vmatpush.msra.mxu0 0.0
  %364 = vmatpush.msra.mxu0 0.0
  %365 = vmatpush.msra.mxu0 0.0
  %366 = vmatpush.msra.mxu0 0.0
  %367 = vmatpush.msra.mxu0 0.0
  %368 = vmatpush.msra.mxu0 %v351
  %369 = vmatpush.msra.mxu0 %v349
  %370 = vmatmul.f32.gmra.mxu0 %v293
  %v371 = vpop.f32.mrf.mxu0
  %v372 = vadd.f32 %v345, %v371
  %373 = vmatmul.f32.gmra.mxu0 %v296
  %v374 = vpop.f32.mrf.mxu0
  %v375 = vadd.f32 %v345, %v374
  %376 = vmatmul.f32.gmra.mxu0 %v299
  %v377 = vpop.f32.mrf.mxu0
  %v378 = vadd.f32 %v345, %v377
  %379 = vmatmul.f32.gmra.mxu0 %v302
  %v380 = vpop.f32.mrf.mxu0
  %v381 = vadd.f32 %v345, %v380
  %382 = vmatmul.f32.gmra.mxu0 %v305
  %v383 = vpop.f32.mrf.mxu0
  %v384 = vadd.f32 %v345, %v383
  %385 = vmatmul.f32.gmra.mxu0 %v308
  %v386 = vpop.f32.mrf.mxu0
  %v387 = vadd.f32 %v345, %v386
  %388 = vdwg.mxu0
  %v389 = vlaneseq
  %v390 = vshrl.u32 %v389, 7
  %v391 = vadd.s32 %v390, 8
  %v392 = vlaneseq
  %v393 = vand.u32 %v392, 127
  %vm394 = vcmp.eq.s32.totalorder %v390, %v393
  %vm395 = vcmp.eq.s32.totalorder %v391, %v393
  %v396 = vsel %vm394, 1, 0
  %v397 = vsel %vm395, 1, 0
  %v398 = vcvt.s32.f32 %v396
  %v399 = vcvt.s32.f32 %v397
  %v401 = vsel %vm170, %v398, 0
  %v404 = vsel %vm170, %v399, 0
  %406 = vmatpush.xpose.msra.mxu0 0.0
  %407 = vmatpush.xpose.msra.mxu0 0.0
  %408 = vmatpush.xpose.msra.mxu0 0.0
  %409 = vmatpush.xpose.msra.mxu0 0.0
  %410 = vmatpush.xpose.msra.mxu0 0.0
  %411 = vmatpush.xpose.msra.mxu0 0.0
  %412 = vmatpush.xpose.msra.mxu0 0.0
  %413 = vmatpush.xpose.msra.mxu0 0.0
  %414 = vmatpush.xpose.msra.mxu0 0.0
  %415 = vmatpush.xpose.msra.mxu0 0.0
  %416 = vmatpush.xpose.msra.mxu0 0.0
  %417 = vmatpush.xpose.msra.mxu0 0.0
  %418 = vmatpush.xpose.msra.mxu0 0.0
  %419 = vmatpush.xpose.msra.mxu0 %v178
  %420 = vmatpush.xpose.msra.mxu0 %v175
  %421 = vmatpush.xpose.msra.mxu0 %v172
  %422 = vmatmul.f32.gmra.mxu0 %v401
  %v423 = vpop.f32.mrf.mxu0
  %v424 = vadd.f32 0.0, %v423
  %425 = vmatmul.f32.gmra.mxu0 %v404
  %v426 = vpop.f32.mrf.mxu0
  %v427 = vadd.f32 0.0, %v426
  %428 = vdwg.mxu0
  %v429 = vperm.slane %v46, 7
  %v433 = vrot.slane %v35, 4
  %v434 = vsel %vm104, %v350, %v433
  %v435 = vrot.slane %v36, 4
  %v436 = vsel %vm104, %v433, %v435
  %v437 = vrot.slane %v37, 4
  %v438 = vsel %vm104, %v435, %v437
  %vm442 = vcmask 195584
  %v444 = vsel %vm442, %v424, 0
  %v447 = vsel %vm442, %v427, 0
  %449 = vmatpush.msra.mxu0 0.0
  %450 = vmatpush.msra.mxu0 0.0
  %451 = vmatpush.msra.mxu0 0.0
  %452 = vmatpush.msra.mxu0 0.0
  %453 = vmatpush.msra.mxu0 0.0
  %454 = vmatpush.msra.mxu0 0.0
  %455 = vmatpush.msra.mxu0 0.0
  %456 = vmatpush.msra.mxu0 0.0
  %457 = vmatpush.msra.mxu0 0.0
  %458 = vmatpush.msra.mxu0 0.0
  %459 = vmatpush.msra.mxu0 0.0
  %460 = vmatpush.msra.mxu0 0.0
  %461 = vmatpush.msra.mxu0 0.0
  %462 = vmatpush.msra.mxu0 %v438
  %463 = vmatpush.msra.mxu0 %v436
  %464 = vmatpush.msra.mxu0 %v434
  %465 = vmatmul.f32.gmra.mxu0 %v444
  %v466 = vpop.f32.mrf.mxu0
  %v467 = vadd.f32 %v429, %v466
  %468 = vmatmul.f32.gmra.mxu0 %v447
  %v469 = vpop.f32.mrf.mxu0
  %v470 = vadd.f32 %v429, %v469
  %471 = vdwg.mxu0
  %v472 = vtanh.pop %v467
  %v473 = vtanh.pop %v470
  %v474 = vperm.slane %v47, 0
  %v477 = vrot.slane %v38, 4
  %v478 = vsel %vm104, %v437, %v477
  %v479 = vrot.slane %v39, 4
  %v480 = vsel %vm104, %v477, %v479
  %v484 = vsel %vm170, %v54, 0
  %v487 = vsel %vm170, %v55, 0
  %v490 = vsel %vm170, %v56, 0
  %v493 = vsel %vm170, %v57, 0
  %495 = vmatpush.msra.mxu0 0.0
  %496 = vmatpush.msra.mxu0 0.0
  %497 = vmatpush.msra.mxu0 0.0
  %498 = vmatpush.msra.mxu0 0.0
  %499 = vmatpush.msra.mxu0 0.0
  %500 = vmatpush.msra.mxu0 0.0
  %501 = vmatpush.msra.mxu0 0.0
  %502 = vmatpush.msra.mxu0 0.0
  %503 = vmatpush.msra.mxu0 0.0
  %504 = vmatpush.msra.mxu0 0.0
  %505 = vmatpush.msra.mxu0 0.0
  %506 = vmatpush.msra.mxu0 0.0
  %507 = vmatpush.msra.mxu0 0.0
  %508 = vmatpush.msra.mxu0 0.0
  %509 = vmatpush.msra.mxu0 %v480
  %510 = vmatpush.msra.mxu0 %v478
  %511 = vmatmul.f32.gmra.mxu0 %v484
  %v512 = vpop.f32.mrf.mxu0
  %v513 = vadd.f32 %v474, %v512
  %514 = vmatmul.f32.gmra.mxu0 %v487
  %v515 = vpop.f32.mrf.mxu0
  %v516 = vadd.f32 %v474, %v515
  %517 = vmatmul.f32.gmra.mxu0 %v490
  %v518 = vpop.f32.mrf.mxu0
  %v519 = vadd.f32 %v474, %v518
  %520 = vmatmul.f32.gmra.mxu0 %v493
  %v521 = vpop.f32.mrf.mxu0
  %v522 = vadd.f32 %v474, %v521
  %523 = vdwg.mxu0
  %v524 = vtanh.pop %v513
  %v525 = vtanh.pop %v516
  %v526 = vtanh.pop %v519
  %v527 = vtanh.pop %v522
  %v528 = vadd.f32 %v472, %v524
  %v529 = vadd.f32 %v473, %v525
  %v530 = vadd.f32 %v472, %v526
  %v531 = vadd.f32 %v473, %v527
  %v532 = vperm.slane %v47, 1
  %v535 = vrot.slane %v40, 4
  %v536 = vsel %vm104, %v479, %v535
  %v537 = vrot.slane %v41, 4
  %v538 = vsel %vm104, %v535, %v537
  %v542 = vsel %vm170, %v528, 0
  %v545 = vsel %vm170, %v529, 0
  %v548 = vsel %vm170, %v530, 0
  %v551 = vsel %vm170, %v531, 0
  %553 = vmatpush.msra.mxu0 0.0
  %554 = vmatpush.msra.mxu0 0.0
  %555 = vmatpush.msra.mxu0 0.0
  %556 = vmatpush.msra.mxu0 0.0
  %557 = vmatpush.msra.mxu0 0.0
  %558 = vmatpush.msra.mxu0 0.0
  %559 = vmatpush.msra.mxu0 0.0
  %560 = vmatpush.msra.mxu0 0.0
  %561 = vmatpush.msra.mxu0 0.0
  %562 = vmatpush.msra.mxu0 0.0
  %563 = vmatpush.msra.mxu0 0.0
  %564 = vmatpush.msra.mxu0 0.0
  %565 = vmatpush.msra.mxu0 0.0
  %566 = vmatpush.msra.mxu0 0.0
  %567 = vmatpush.msra.mxu0 %v538
  %568 = vmatpush.msra.mxu0 %v536
  %569 = vmatmul.f32.gmra.mxu0 %v542
  %v570 = vpop.f32.mrf.mxu0
  %v571 = vadd.f32 %v532, %v570
  %572 = vmatmul.f32.gmra.mxu0 %v545
  %v573 = vpop.f32.mrf.mxu0
  %v574 = vadd.f32 %v532, %v573
  %575 = vmatmul.f32.gmra.mxu0 %v548
  %v576 = vpop.f32.mrf.mxu0
  %v577 = vadd.f32 %v532, %v576
  %578 = vmatmul.f32.gmra.mxu0 %v551
  %v579 = vpop.f32.mrf.mxu0
  %v580 = vadd.f32 %v532, %v579
  %581 = vdwg.mxu0
  %v582 = vperm.slane %v47, 2
  %v585 = vrot.slane %v42, 4
  %v586 = vsel %vm104, %v537, %v585
  %v587 = vrot.slane %v43, 4
  %v588 = vsel %vm104, %v585, %v587
  %591 = vmatpush.msra.mxu0 0.0
  %592 = vmatpush.msra.mxu0 0.0
  %593 = vmatpush.msra.mxu0 0.0
  %594 = vmatpush.msra.mxu0 0.0
  %595 = vmatpush.msra.mxu0 0.0
  %596 = vmatpush.msra.mxu0 0.0
  %597 = vmatpush.msra.mxu0 0.0
  %598 = vmatpush.msra.mxu0 0.0
  %599 = vmatpush.msra.mxu0 0.0
  %600 = vmatpush.msra.mxu0 0.0
  %601 = vmatpush.msra.mxu0 0.0
  %602 = vmatpush.msra.mxu0 0.0
  %603 = vmatpush.msra.mxu0 0.0
  %604 = vmatpush.msra.mxu0 0.0
  %605 = vmatpush.msra.mxu0 %v588
  %606 = vmatpush.msra.mxu0 %v586
  %607 = vmatmul.f32.gmra.mxu0 %v542
  %v608 = vpop.f32.mrf.mxu0
  %v609 = vadd.f32 %v582, %v608
  %610 = vmatmul.f32.gmra.mxu0 %v545
  %v611 = vpop.f32.mrf.mxu0
  %v612 = vadd.f32 %v582, %v611
  %613 = vmatmul.f32.gmra.mxu0 %v548
  %v614 = vpop.f32.mrf.mxu0
  %v615 = vadd.f32 %v582, %v614
  %616 = vmatmul.f32.gmra.mxu0 %v551
  %v617 = vpop.f32.mrf.mxu0
  %v618 = vadd.f32 %v582, %v617
  %619 = vdwg.mxu0
  %v620 = vmul.f32 %v381, 0.5
  %v621 = vmul.f32 %v384, 0.5
  %v622 = vmul.f32 %v387, 0.5
  %v623 = vmul.f32 %v620, 1.442695
  %v624 = vpow.pop %v623
  %v625 = vmul.f32 %v621, 1.442695
  %v626 = vpow.pop %v625
  %v627 = vmul.f32 %v622, 1.442695
  %v628 = vpow.pop %v627
  %v629 = vmul.f32 %v58, %v624
  %v630 = vmul.f32 %v59, %v626
  %v631 = vmul.f32 %v60, %v628
  %v632 = vadd.f32 %v629, %v337
  %v633 = vadd.f32 %v630, %v340
  %v634 = vadd.f32 %v631, %v343
  %v635 = vmul.f32 %v615, 0.5
  %v636 = vmul.f32 %v618, 0.5
  %v637 = vmul.f32 %v635, 1.442695
  %v638 = vpow.pop %v637
  %v639 = vmul.f32 %v636, 1.442695
  %v640 = vpow.pop %v639
  %v641 = vmul.f32 %v61, %v638
  %v642 = vmul.f32 %v62, %v640
  %v643 = vadd.f32 %v641, %v577
  %v644 = vadd.f32 %v642, %v580
  %vm645 = vcmask 64512
  %v647 = vsel %vm645, %v632, 0
  %v650 = vsel %vm645, %v633, 0
  %v653 = vsel %vm645, %v634, 0
  %655 = vmatpush.xpose.msra.mxu0 0.0
  %656 = vmatpush.xpose.msra.mxu0 0.0
  %657 = vmatpush.xpose.msra.mxu0 0.0
  %658 = vmatpush.xpose.msra.mxu0 0.0
  %659 = vmatpush.xpose.msra.mxu0 0.0
  %660 = vmatpush.xpose.msra.mxu0 0.0
  %661 = vmatpush.xpose.msra.mxu0 0.0
  %662 = vmatpush.xpose.msra.mxu0 0.0
  %663 = vmatpush.xpose.msra.mxu0 0.0
  %664 = vmatpush.xpose.msra.mxu0 0.0
  %665 = vmatpush.xpose.msra.mxu0 0.0
  %666 = vmatpush.xpose.msra.mxu0 0.0
  %667 = vmatpush.xpose.msra.mxu0 0.0
  %668 = vmatpush.xpose.msra.mxu0 %v653
  %669 = vmatpush.xpose.msra.mxu0 %v650
  %670 = vmatpush.xpose.msra.mxu0 %v647
  %671 = vmatmul.f32.gmra.mxu0 %v647
  %v672 = vpop.f32.mrf.mxu0
  %v673 = vadd.f32 0.0, %v672
  %674 = vdwg.mxu0
  %v675 = vxor.u32 %v673, 2147483648
  %v676 = vmul.f32 %v675, 1.442695
  %v677 = vpow.pop %v676
  %v678 = vadd.f32 %v677, 1.0
  %v679 = vrcp.pop %v678
  %v680 = vmul.f32 %v678, %v679
  %v681 = vsub.f32 1.0, %v680
  %v682 = vmul.f32 %v679, %v681
  %v683 = vadd.f32 %v679, %v682
  %vm684 = vweird.f32 %v678
  %vm685 = vweird.f32 %v679
  %vm686 = vmor %vm684, %vm685
  %v687 = vsel %vm686, %v679, %v683
  %v688 = vand.u32 2147483647, %v678
  %vm689 = vcmp.eq.f32.partialorder %v688, 8.507059e+37
  %v690 = vand.u32 %v678, 2147483648
  %v691 = vor.u32 1.1754944e-38, %v690
  %v692 = vsel %vm689, %v691, %v687
  %v693 = vmul.f32 1.0, %v692
  %v694 = vadd.f32 %v693, 0.0
  %v696 = vsel %vm645, %v643, 0
  %v699 = vsel %vm645, %v644, 0
  %701 = vmatpush.xpose.msra.mxu0 0.0
  %702 = vmatpush.xpose.msra.mxu0 0.0
  %703 = vmatpush.xpose.msra.mxu0 0.0
  %704 = vmatpush.xpose.msra.mxu0 0.0
  %705 = vmatpush.xpose.msra.mxu0 0.0
  %706 = vmatpush.xpose.msra.mxu0 0.0
  %707 = vmatpush.xpose.msra.mxu0 0.0
  %708 = vmatpush.xpose.msra.mxu0 0.0
  %709 = vmatpush.xpose.msra.mxu0 0.0
  %710 = vmatpush.xpose.msra.mxu0 0.0
  %711 = vmatpush.xpose.msra.mxu0 0.0
  %712 = vmatpush.xpose.msra.mxu0 0.0
  %713 = vmatpush.xpose.msra.mxu0 0.0
  %714 = vmatpush.xpose.msra.mxu0 0.0
  %715 = vmatpush.xpose.msra.mxu0 %v699
  %716 = vmatpush.xpose.msra.mxu0 %v696
  %717 = vmatmul.f32.gmra.mxu0 %v647
  %v718 = vpop.f32.mrf.mxu0
  %v719 = vadd.f32 0.0, %v718
  %720 = vmatmul.f32.gmra.mxu0 %v650
  %v721 = vpop.f32.mrf.mxu0
  %v722 = vadd.f32 0.0, %v721
  %723 = vmatmul.f32.gmra.mxu0 %v653
  %v724 = vpop.f32.mrf.mxu0
  %v725 = vadd.f32 0.0, %v724
  %726 = vdwg.mxu0
  %v727 = vtanh.pop %v719
  %v728 = vtanh.pop %v722
  %v729 = vtanh.pop %v725
  %v730 = vadd.f32 %v727, 0.0
  %v731 = vadd.f32 %v728, 0.0
  %v732 = vadd.f32 %v729, 0.0
  %v733 = vperm.slane %v47, 3
  %v736 = vrot.slane %v44, 4
  %v737 = vsel %vm104, %v587, %v736
  %v738 = vrot.slane %v45, 4
  %v739 = vsel %vm104, %v736, %v738
  %v743 = vsel %vm170, %v730, 0
  %745 = vmatpush.msra.mxu0 0.0
  %746 = vmatpush.msra.mxu0 0.0
  %747 = vmatpush.msra.mxu0 0.0
  %748 = vmatpush.msra.mxu0 0.0
  %749 = vmatpush.msra.mxu0 0.0
  %750 = vmatpush.msra.mxu0 0.0
  %751 = vmatpush.msra.mxu0 0.0
  %752 = vmatpush.msra.mxu0 0.0
  %753 = vmatpush.msra.mxu0 0.0
  %754 = vmatpush.msra.mxu0 0.0
  %755 = vmatpush.msra.mxu0 0.0
  %756 = vmatpush.msra.mxu0 0.0
  %757 = vmatpush.msra.mxu0 0.0
  %758 = vmatpush.msra.mxu0 0.0
  %759 = vmatpush.msra.mxu0 %v739
  %760 = vmatpush.msra.mxu0 %v737
  %761 = vmatmul.f32.gmra.mxu0 %v743
  %v762 = vpop.f32.mrf.mxu0
  %v763 = vadd.f32 %v733, %v762
  %764 = vdwg.mxu0
  %v765 = vxor.u32 %v763, 2147483648
  %v766 = vmul.f32 %v765, 1.442695
  %v767 = vpow.pop %v766
  %v768 = vadd.f32 %v767, 1.0
  %v769 = vrcp.pop %v768
  %v770 = vmul.f32 %v768, %v769
  %v771 = vsub.f32 1.0, %v770
  %v772 = vmul.f32 %v769, %v771
  %v773 = vadd.f32 %v769, %v772
  %vm774 = vweird.f32 %v768
  %vm775 = vweird.f32 %v769
  %vm776 = vmor %vm774, %vm775
  %v777 = vsel %vm776, %v769, %v773
  %v778 = vand.u32 2147483647, %v768
  %vm779 = vcmp.eq.f32.partialorder %v778, 8.507059e+37
  %v780 = vand.u32 %v768, 2147483648
  %v781 = vor.u32 1.1754944e-38, %v780
  %v782 = vsel %vm779, %v781, %v777
  %v783 = vmul.f32 1.0, %v782
  %784 = vst [vmem:[%s5] sm:$0xff] 0.0
  %785 = vst [vmem:[%s5 + $0x8] sm:$0xff] 0.0
  %786 = vst [vmem:[%s5 + $0x10] sm:$0xff] 0.0
  %787 = vst [vmem:[%s5 + $0x18] sm:$0xff] 0.0
  %788 = vst [vmem:[%s5 + $0x20] sm:$0xff] 0.0
  %789 = vst [vmem:[%s5 + $0x28] sm:$0xff] 0.0
  %790 = vst.msk [vmem:[%s5] sm:$0xff] %vm645, %v328
  %791 = vst.msk [vmem:[%s5 + $0x8] sm:$0xff] %vm645, %v331
  %792 = vst.msk [vmem:[%s5 + $0x10] sm:$0xff] %vm645, %v334
  %793 = vst.msk [vmem:[%s5 + $0x18] sm:$0xff] %vm645, %v337
  %794 = vst.msk [vmem:[%s5 + $0x20] sm:$0xff] %vm645, %v340
  %795 = vst.msk [vmem:[%s5 + $0x28] sm:$0xff] %vm645, %v343
  %802 = vrot.lane.b32.xlu0 %v372, 8
  %v803 = vpop.permute.xlu0 %802
  %804 = vrot.lane.b32.xlu0 %v375, 8
  %v805 = vpop.permute.xlu0 %804
  %806 = vrot.lane.b32.xlu0 %v378, 8
  %v807 = vpop.permute.xlu0 %806
  %808 = vrot.lane.b32.xlu0 %v381, 8
  %v809 = vpop.permute.xlu0 %808
  %810 = vrot.lane.b32.xlu0 %v384, 8
  %v811 = vpop.permute.xlu0 %810
  %812 = vrot.lane.b32.xlu0 %v387, 8
  %v813 = vpop.permute.xlu0 %812
  %vm820 = vcmask 130112
  %821 = vst.msk [vmem:[%s5] sm:$0xff] %vm820, %v803
  %822 = vst.msk [vmem:[%s5 + $0x8] sm:$0xff] %vm820, %v805
  %823 = vst.msk [vmem:[%s5 + $0x10] sm:$0xff] %vm820, %v807
  %824 = vst.msk [vmem:[%s5 + $0x18] sm:$0xff] %vm820, %v809
  %825 = vst.msk [vmem:[%s5 + $0x20] sm:$0xff] %vm820, %v811
  %826 = vst.msk [vmem:[%s5 + $0x28] sm:$0xff] %vm820, %v813
  %831 = vrot.lane.b32.xlu0 %v571, 16
  %v832 = vpop.permute.xlu0 %831
  %833 = vrot.lane.b32.xlu0 %v574, 16
  %v834 = vpop.permute.xlu0 %833
  %835 = vrot.lane.b32.xlu0 %v577, 16
  %v836 = vpop.permute.xlu0 %835
  %837 = vrot.lane.b32.xlu0 %v580, 16
  %v838 = vpop.permute.xlu0 %837
  %vm843 = vcmask 195712
  %844 = vst.msk [vmem:[%s5] sm:$0xff] %vm843, %v832
  %845 = vst.msk [vmem:[%s5 + $0x8] sm:$0xff] %vm843, %v834
  %846 = vst.msk [vmem:[%s5 + $0x10] sm:$0xff] %vm843, %v836
  %847 = vst.msk [vmem:[%s5 + $0x18] sm:$0xff] %vm843, %v838
  %852 = vrot.lane.b32.xlu0 %v609, 24
  %v853 = vpop.permute.xlu0 %852
  %854 = vrot.lane.b32.xlu0 %v612, 24
  %v855 = vpop.permute.xlu0 %854
  %856 = vrot.lane.b32.xlu0 %v615, 24
  %v857 = vpop.permute.xlu0 %856
  %858 = vrot.lane.b32.xlu0 %v618, 24
  %v859 = vpop.permute.xlu0 %858
  %vm864 = vcmask 261312
  %865 = vst.msk [vmem:[%s5] sm:$0xff] %vm864, %v853
  %866 = vst.msk [vmem:[%s5 + $0x8] sm:$0xff] %vm864, %v855
  %867 = vst.msk [vmem:[%s5 + $0x10] sm:$0xff] %vm864, %v857
  %868 = vst.msk [vmem:[%s5 + $0x18] sm:$0xff] %vm864, %v859
  %869 = vrot.lane.b32.xlu0 %v632, 32
  %v870 = vpop.permute.xlu0 %869
  %871 = vrot.lane.b32.xlu0 %v633, 32
  %v872 = vpop.permute.xlu0 %871
  %873 = vrot.lane.b32.xlu0 %v634, 32
  %v874 = vpop.permute.xlu0 %873
  %vm878 = vcmask 326912
  %879 = vst.msk [vmem:[%s5] sm:$0xff] %vm878, %v870
  %880 = vst.msk [vmem:[%s5 + $0x8] sm:$0xff] %vm878, %v872
  %881 = vst.msk [vmem:[%s5 + $0x10] sm:$0xff] %vm878, %v874
  %882 = vrot.lane.b32.xlu0 %v643, 40
  %v883 = vpop.permute.xlu0 %882
  %884 = vrot.lane.b32.xlu0 %v644, 40
  %v885 = vpop.permute.xlu0 %884
  %vm888 = vcmask 392512
  %889 = vst.msk [vmem:[%s5] sm:$0xff] %vm888, %v883
  %890 = vst.msk [vmem:[%s5 + $0x8] sm:$0xff] %vm888, %v885
  %891 = vrot.lane.b32.xlu0 %v92, 48
  %v892 = vpop.permute.xlu0 %891
  %893 = vrot.lane.b32.xlu0 %v127, 48
  %v894 = vpop.permute.xlu0 %893
  %895 = vrot.lane.b32.xlu0 %v159, 48
  %v896 = vpop.permute.xlu0 %895
  %vm900 = vcmask 523648
  %901 = vst.msk [vmem:[%s5] sm:$0xff] %vm900, %v892
  %902 = vst.msk [vmem:[%s5 + $0x8] sm:$0xff] %vm900, %v894
  %903 = vst.msk [vmem:[%s5 + $0x10] sm:$0xff] %vm900, %v896
  %906 = vrot.lane.b32.xlu0 %v730, 64
  %v907 = vpop.permute.xlu0 %906
  %908 = vrot.lane.b32.xlu0 %v731, 64
  %v909 = vpop.permute.xlu0 %908
  %910 = vrot.lane.b32.xlu0 %v732, 64
  %v911 = vpop.permute.xlu0 %910
  %vm915 = vcmask 654848
  %916 = vst.msk [vmem:[%s5] sm:$0xff] %vm915, %v907
  %917 = vst.msk [vmem:[%s5 + $0x8] sm:$0xff] %vm915, %v909
  %918 = vst.msk [vmem:[%s5 + $0x10] sm:$0xff] %vm915, %v911
  %920 = vrot.lane.b32.xlu0 %v694, 80
  %v921 = vpop.permute.xlu0 %920
  %vm923 = vcmask 851584
  %924 = vst.msk [vmem:[%s5] sm:$0xff] %vm923, %v921
  %926 = vrot.lane.b32.xlu0 %v783, 104
  %v927 = vpop.permute.xlu0 %926
  %vm929 = vcmask 933696
  %930 = vst.msk [vmem:[%s5] sm:$0xff] %vm929, %v927
  // Predicated region
  $region22: #{grami_forward.3} parent=0 // pred_check
    _
  $region23: #{grami_forward.3} parent=0 // pred_check_branch
    %932 = sbr.rel (0) target = $region25
  $region24: #{grami_forward.3} parent=0 // pred_region
    _
  $region25: #{grami_forward.3} parent=0 // pred_fallthru
    _
  // Predicated region
  $region26: #{grami_forward.3} parent=0 // pred_check
    _
  $region27: #{grami_forward.3} parent=0 // pred_check_branch
    %934 = sbr.rel (0) target = $region29
  $region28: #{grami_forward.3} parent=0 // pred_region
    _
  $region29: #{grami_forward.3} parent=0 // pred_fallthru
    _

</llo_original>
